<compile_context>
chip_gen: v5e
topology: v5e:2x2
jax: 0.10.0
libtpu: 0.0.40
codegen_flags: <defaults>
</compile_context>

<pallas_src>
import jax
import jax.numpy as jnp
import numpy as np
from jax.experimental import pallas as pl
from jax.experimental.pallas import tpu as pltpu


def _attention_kernel(g_ref, vrep_ref, w1t_ref, b1_ref, sel_ref,
                      w2t_ref, b2_ref, out_ref):
    F = out_ref.shape[-1]

    v32 = g_ref[...]                                   # (1, F)   f32
    v16 = v32.astype(jnp.bfloat16)

    # ats_flat = relu(v @ W1.T + b1)   -> (1, F*F)     (bf16 MXU, f32 accum)
    z = jnp.dot(v16, w1t_ref[...], preferred_element_type=jnp.float32)
    a = jnp.maximum(z + b1_ref[...], 0.0)              # f32 VPU

    # g2 = v @ reshape(ats_flat, (F, F))
    #    = (v_rep * ats_flat) @ SEL     -> (1, F)      (VPU mul + f32 MXU)
    prod = vrep_ref[...] * a                           # (1, F*F) f32
    g2 = jnp.dot(prod, sel_ref[...], preferred_element_type=jnp.float32)

    # out = sigmoid(g2 @ W2.T + b2)    -> (1, F)       (bf16 MXU + EUP sigmoid)
    y = jnp.dot(g2.astype(jnp.bfloat16), w2t_ref[...],
                preferred_element_type=jnp.float32) + b2_ref[...]
    out_ref[...] = jax.nn.sigmoid(y).astype(out_ref.dtype)


def prepare_attention_params(w1, b1, w2, b2):
    """One-time parameter prep, outside the per-call hot path.

    w1: (F*F, F) first Linear weight,  b1: (F*F,)
    w2: (F, F)   second Linear weight, b2: (F,)
    Pre-transposes + pre-casts the weights to bf16 and builds the constant
    chunk-sum selector SEL[r*F + c, c'] = (c == c').
    """
    FF, F = w1.shape
    assert FF == F * F, "expected first Linear weight of shape (F*F, F)"
    sel = jnp.tile(jnp.eye(F, dtype=jnp.float32), (F, 1))              # (F*F, F)
    return {
        "w1t": jnp.asarray(w1, jnp.float32).T.astype(jnp.bfloat16),    # (F, F*F)
        "b1":  jnp.asarray(b1, jnp.float32).reshape(1, F * F),
        "w2t": jnp.asarray(w2, jnp.float32).T.astype(jnp.bfloat16),    # (F, F)
        "b2":  jnp.asarray(b2, jnp.float32).reshape(1, F),
        "sel": sel,
    }


@jax.jit
def attention_forward(g, params):
    """Pallas forward of Attention for a single feature vector g: (F,) -> (F,)."""
    F = g.shape[-1]
    g_row = jnp.asarray(g, jnp.float32).reshape(1, F)
    # v_rep[0, r*F + c] = g[r]  -- enables the reshape-free second contraction.
    v_rep = jnp.repeat(g_row, F, axis=1)                               # (1, F*F)

    vmem = pl.BlockSpec(memory_space=pltpu.MemorySpace.VMEM)
    out = pl.pallas_call(
        _attention_kernel,
        out_shape=jax.ShapeDtypeStruct((1, F), jnp.float32),
        in_specs=[vmem] * 7,
        out_specs=vmem,
    )(g_row, v_rep, params["w1t"], params["b1"], params["sel"],
      params["w2t"], params["b2"])
    return out.reshape(F)


def attention_reference(g, w1, b1, w2, b2):
    """Pure-JAX f32 reference mirroring the PyTorch forward exactly."""
    F = g.shape[-1]
    v = jnp.asarray(g, jnp.float32).reshape(-1)
    ats = jax.nn.relu(w1 @ v + b1).reshape(F, F)
    g2 = v @ ats
    return jax.nn.sigmoid(w2 @ g2 + b2)


def attention_matched_reference(g, params):
    """Reference using the exact same bf16/f32 cast points as the kernel."""
    F = g.shape[-1]
    v32 = jnp.asarray(g, jnp.float32).reshape(1, F)
    v16 = v32.astype(jnp.bfloat16)
    z = jnp.dot(v16, params["w1t"], preferred_element_type=jnp.float32)
    a = jnp.maximum(z + params["b1"], 0.0)
    v_rep = jnp.repeat(v32, F, axis=1)
    g2 = jnp.dot(v_rep * a, params["sel"], preferred_element_type=jnp.float32)
    y = jnp.dot(g2.astype(jnp.bfloat16), params["w2t"],
                preferred_element_type=jnp.float32) + params["b2"]
    return jax.nn.sigmoid(y).reshape(F)


if __name__ == "__main__":
    F = 16  # feats
    key = jax.random.PRNGKey(0)
    kg, k1, k2, k3, k4 = jax.random.split(key, 5)

    # Deterministic parameter init (PyTorch Linear-style uniform bounds).
    bound = 1.0 / np.sqrt(F)
    g = jax.random.normal(kg, (F,), jnp.float32)
    w1 = jax.random.uniform(k1, (F * F, F), jnp.float32, -bound, bound)
    b1 = jax.random.uniform(k2, (F * F,), jnp.float32, -bound, bound)
    w2 = jax.random.uniform(k3, (F, F), jnp.float32, -bound, bound)
    b2 = jax.random.uniform(k4, (F,), jnp.float32, -bound, bound)

    params = prepare_attention_params(w1, b1, w2, b2)   # one-time prep
    out = jax.block_until_ready(attention_forward(g, params))

    # Structural correctness vs a reference with identical bf16 cast points.
    matched = attention_matched_reference(g, params)
    np.testing.assert_allclose(np.asarray(out), np.asarray(matched),
                               rtol=1e-3, atol=1e-3)

    # End-to-end vs the f32 PyTorch-equivalent forward; difference is bounded
    # by the intentional bf16 weight/activation rounding fed to the MXU.
    ref = attention_reference(g, w1, b1, w2, b2)
    np.testing.assert_allclose(np.asarray(out), np.asarray(ref),
                               rtol=3e-2, atol=3e-2)
    print("KERNEL_OK")
</pallas_src>

<mosaic_0001>
module attributes {stable_mosaic.version = 11 : i64} {
  func.func @_attention_kernel(%arg0: memref<1x16xf32, #tpu.memory_space<vmem>>, %arg1: memref<1x256xf32, #tpu.memory_space<vmem>>, %arg2: memref<16x256xbf16, #tpu.memory_space<vmem>>, %arg3: memref<1x256xf32, #tpu.memory_space<vmem>>, %arg4: memref<256x16xf32, #tpu.memory_space<vmem>>, %arg5: memref<16x16xbf16, #tpu.memory_space<vmem>>, %arg6: memref<1x16xf32, #tpu.memory_space<vmem>>, %arg7: memref<1x16xf32, #tpu.memory_space<vmem>>) attributes {dimension_semantics = [], scalar_prefetch = 0 : i64, scratch_operands = 0 : i64, tpu.core_type = #tpu.core_type<tc>} {
    %c0 = arith.constant 0 : index
    %c0_0 = arith.constant 0 : index
    %0 = vector.load %arg0[%c0, %c0_0] : memref<1x16xf32, #tpu.memory_space<vmem>>, vector<1x16xf32>
    %1 = arith.truncf %0 : vector<1x16xf32> to vector<1x16xbf16>
    %c0_1 = arith.constant 0 : index
    %c0_2 = arith.constant 0 : index
    %2 = vector.load %arg2[%c0_1, %c0_2] : memref<16x256xbf16, #tpu.memory_space<vmem>>, vector<16x256xbf16>
    %cst = arith.constant dense<0.000000e+00> : vector<1x256xf32>
    %3 = tpu.matmul %1, %2, %cst {dimension_numbers = #tpu.dot_dimension_numbers<[1], [0], [0], [1], [0, 0, 1, 1], [], []>} : vector<1x16xbf16>, vector<16x256xbf16>, vector<1x256xf32> -> vector<1x256xf32>
    %c0_3 = arith.constant 0 : index
    %c0_4 = arith.constant 0 : index
    %4 = vector.load %arg3[%c0_3, %c0_4] : memref<1x256xf32, #tpu.memory_space<vmem>>, vector<1x256xf32>
    %5 = arith.addf %3, %4 : vector<1x256xf32>
    %cst_5 = arith.constant 0.000000e+00 : f32
    %6 = vector.broadcast %cst_5 : f32 to vector<1x256xf32>
    %7 = arith.maximumf %5, %6 : vector<1x256xf32>
    %c0_6 = arith.constant 0 : index
    %c0_7 = arith.constant 0 : index
    %8 = vector.load %arg1[%c0_6, %c0_7] : memref<1x256xf32, #tpu.memory_space<vmem>>, vector<1x256xf32>
    %9 = arith.mulf %8, %7 : vector<1x256xf32>
    %c0_8 = arith.constant 0 : index
    %c0_9 = arith.constant 0 : index
    %10 = vector.load %arg4[%c0_8, %c0_9] : memref<256x16xf32, #tpu.memory_space<vmem>>, vector<256x16xf32>
    %cst_10 = arith.constant dense<0.000000e+00> : vector<1x16xf32>
    %11 = tpu.matmul %9, %10, %cst_10 {dimension_numbers = #tpu.dot_dimension_numbers<[1], [0], [0], [1], [0, 0, 1, 1], [], []>} : vector<1x256xf32>, vector<256x16xf32>, vector<1x16xf32> -> vector<1x16xf32>
    %12 = arith.truncf %11 : vector<1x16xf32> to vector<1x16xbf16>
    %c0_11 = arith.constant 0 : index
    %c0_12 = arith.constant 0 : index
    %13 = vector.load %arg5[%c0_11, %c0_12] : memref<16x16xbf16, #tpu.memory_space<vmem>>, vector<16x16xbf16>
    %cst_13 = arith.constant dense<0.000000e+00> : vector<1x16xf32>
    %14 = tpu.matmul %12, %13, %cst_13 {dimension_numbers = #tpu.dot_dimension_numbers<[1], [0], [0], [1], [0, 0, 1, 1], [], []>} : vector<1x16xbf16>, vector<16x16xbf16>, vector<1x16xf32> -> vector<1x16xf32>
    %c0_14 = arith.constant 0 : index
    %c0_15 = arith.constant 0 : index
    %15 = vector.load %arg6[%c0_14, %c0_15] : memref<1x16xf32, #tpu.memory_space<vmem>>, vector<1x16xf32>
    %16 = arith.addf %14, %15 : vector<1x16xf32>
    %17 = arith.negf %16 : vector<1x16xf32>
    %18 = math.exp %17 : vector<1x16xf32>
    %cst_16 = arith.constant 1.000000e+00 : f32
    %19 = vector.broadcast %cst_16 : f32 to vector<1x16xf32>
    %20 = arith.addf %19, %18 : vector<1x16xf32>
    %21 = arith.divf %19, %20 : vector<1x16xf32>
    %c0_17 = arith.constant 0 : index
    %c0_18 = arith.constant 0 : index
    %22 = vector.load %arg7[%c0_17, %c0_18] : memref<1x16xf32, #tpu.memory_space<vmem>>, vector<1x16xf32>
    tpu.vector_store %arg7[%c0_17, %c0_18], %21 {strides = array<i32>} : memref<1x16xf32, #tpu.memory_space<vmem>>, vector<1x16xf32>,
    return
  }
}

</mosaic_0001>

<llo_original>
// kernel: attention_forward.1
$region0: #{attention_forward.1}
  #allocation0 [shape = 'u32[]', space=smem, size = 0x4, offset = 0x4, fixed_abs, tag = 'smem constant byte address 0x4 - core index']
  #allocation1 [shape = 'u32[72,128]{1,0:T(1,128)}', space=vmem, size = 0x9000, scoped, tag = 'internal scratch']
  %s0 = inlined_call_operand.vmem [shape: f32[1,16], index: 0, kind: input, shape index: {}]
  %s1 = inlined_call_operand.vmem [shape: f32[1,256], index: 1, kind: input, shape index: {}]
  %s2 = inlined_call_operand.vmem [shape: bf16[16,256], index: 2, kind: input, shape index: {}]
  %s3 = inlined_call_operand.vmem [shape: f32[1,256], index: 3, kind: input, shape index: {}]
  %s4 = inlined_call_operand.vmem [shape: f32[256,16], index: 4, kind: input, shape index: {}]
  %s5 = inlined_call_operand.vmem [shape: bf16[16,16], index: 5, kind: input, shape index: {}]
  %s6 = inlined_call_operand.vmem [shape: f32[1,16], index: 6, kind: input, shape index: {}]
  %s7 = inlined_call_operand.hbm [shape: f32[1,16], index: 7, kind: output, shape index: {}]
  %s8 = sld [smem:[#allocation0]]
  $region38: #{attention_forward.1} parent=0
    _
  %s10 = ssub.s32 1, %s8
  %s11 = scalar_select 0, %s10, %s8
  $region1: #{attention_forward.1} parent=0
    #allocation2 [shape = 'u8[512]{0}', space=vmem, size = 0x400, scoped, tag = 'output window, operand 0, single buffered']
    #allocation3 [shape = 's32[1]{0}', space=sflag, size = 0x4, scoped, tag = 'scoped memory for attention_forward.1']
    %12 = vsyncpa [#allocation3], 0
    // Predicated region
    $region2: #{attention_forward.1} parent=1 // pred_check
      _
    $region3: #{attention_forward.1} parent=1 // pred_check_branch
      %14 = sbr.rel (0) target = $region5
    $region4: #{attention_forward.1} parent=1 // pred_region
      _
    $region5: #{attention_forward.1} parent=1 // pred_fallthru
      _
    // Predicated region
    $region6: #{attention_forward.1} parent=1 // pred_check
      _
    $region7: #{attention_forward.1} parent=1 // pred_check_branch
      %16 = sbr.rel (0) target = $region9
    $region8: #{attention_forward.1} parent=1 // pred_region
      _
    $region9: #{attention_forward.1} parent=1 // pred_fallthru
      _
    // Predicated region
    $region10: #{attention_forward.1} parent=1 // pred_check
      _
    $region11: #{attention_forward.1} parent=1 // pred_check_branch
      %18 = sbr.rel (0) target = $region13
    $region12: #{attention_forward.1} parent=1 // pred_region
      _
    $region13: #{attention_forward.1} parent=1 // pred_fallthru
      _
    // Predicated region
    $region14: #{attention_forward.1} parent=1 // pred_check
      _
    $region15: #{attention_forward.1} parent=1 // pred_check_branch
      %20 = sbr.rel (0) target = $region17
    $region16: #{attention_forward.1} parent=1 // pred_region
      _
    $region17: #{attention_forward.1} parent=1 // pred_fallthru
      _
    // Predicated region
    $region18: #{attention_forward.1} parent=1 // pred_check
      _
    $region19: #{attention_forward.1} parent=1 // pred_check_branch
      %22 = sbr.rel (0) target = $region21
    $region20: #{attention_forward.1} parent=1 // pred_region
      _
    $region21: #{attention_forward.1} parent=1 // pred_fallthru
      _
    // Predicated region
    $region22: #{attention_forward.1} parent=1 // pred_check
      _
    $region23: #{attention_forward.1} parent=1 // pred_check_branch
      %24 = sbr.rel (0) target = $region25
    $region24: #{attention_forward.1} parent=1 // pred_region
      _
    $region25: #{attention_forward.1} parent=1 // pred_fallthru
      _
    // Predicated region
    $region26: #{attention_forward.1} parent=1 // pred_check
      _
    $region27: #{attention_forward.1} parent=1 // pred_check_branch
      %26 = sbr.rel (0) target = $region29
    $region28: #{attention_forward.1} parent=1 // pred_region
      _
    $region29: #{attention_forward.1} parent=1 // pred_fallthru
      _
    %v28 = vld [vmem:[%s0] sm:$0x1]
    %v29 = vpack.c.bf16 %v28, %v28
    %v30 = vld [vmem:[%s2] sm:$0xff]
    %v31 = vld [vmem:[%s2 + $0x8] sm:$0xff]
    %v32 = vld [vmem:[%s3] sm:$0x3]
    %v35 = vunpack.c.l.b16 %v30
    %v36 = vunpack.c.h.b16 %v30
    %v37 = vunpack.c.l.b16 %v31
    %v38 = vunpack.c.h.b16 %v31
    %v39 = vpack.c.b16 %v37, %v35
    %v40 = vpack.c.b16 %v38, %v36
    %v44 = vperm.slane %v32, 0
    %v45 = vperm.slane %v32, 1
    %vm48 = vcmask 130048
    %v50 = vsel %vm48, %v29, 0
    %52 = vmatpush.bf16.msra.mxu0 0
    %53 = vmatpush.bf16.msra.mxu0 0
    %54 = vmatpush.bf16.msra.mxu0 0
    %55 = vmatpush.bf16.msra.mxu0 0
    %56 = vmatpush.bf16.msra.mxu0 0
    %57 = vmatpush.bf16.msra.mxu0 0
    %58 = vmatpush.bf16.msra.mxu0 0
    %59 = vmatpush.bf16.msra.mxu0 %v39
    %60 = vmatmul.bf16.gmra.mxu0 %v50
    %v61 = vpop.f32.mrf.mxu0
    %v62 = vadd.f32 %v44, %v61
    %v63 = vpop.f32.mrf.mxu0
    %64 = vdwg.mxu0
    %65 = vmatpush.bf16.msra.mxu0 0
    %66 = vmatpush.bf16.msra.mxu0 0
    %67 = vmatpush.bf16.msra.mxu0 0
    %68 = vmatpush.bf16.msra.mxu0 0
    %69 = vmatpush.bf16.msra.mxu0 0
    %70 = vmatpush.bf16.msra.mxu0 0
    %71 = vmatpush.bf16.msra.mxu0 0
    %72 = vmatpush.bf16.msra.mxu0 %v40
    %73 = vmatmul.bf16.gmra.mxu0 %v50
    %v74 = vpop.f32.mrf.mxu0
    %v75 = vadd.f32 %v45, %v74
    %v76 = vpop.f32.mrf.mxu0
    %77 = vdwg.mxu0
    %v78 = vmax.f32 %v62, 0.0
    %v79 = vmax.f32 %v75, 0.0
    %v80 = vld [vmem:[%s1] sm:$0x3]
    %v83 = vrot.slane %v79, 7
    %vm84 = vcmask 1040384
    %v85 = vsel %vm84, %v78, %v83
    %v87 = vmul.f32 %v80, %v85
    %v88 = vld [vmem:[%s4] sm:$0xff]
    %v89 = vld [vmem:[%s4 + $0x8] sm:$0xff]
    %v90 = vld [vmem:[%s4 + $0x10] sm:$0xff]
    %v91 = vld [vmem:[%s4 + $0x18] sm:$0xff]
    %v92 = vld [vmem:[%s4 + $0x20] sm:$0xff]
    %v93 = vld [vmem:[%s4 + $0x28] sm:$0xff]
    %v94 = vld [vmem:[%s4 + $0x30] sm:$0xff]
    %v95 = vld [vmem:[%s4 + $0x38] sm:$0xff]
    %v96 = vld [vmem:[%s4 + $0x40] sm:$0xff]
    %v97 = vld [vmem:[%s4 + $0x48] sm:$0xff]
    %v98 = vld [vmem:[%s4 + $0x50] sm:$0xff]
    %v99 = vld [vmem:[%s4 + $0x58] sm:$0xff]
    %v100 = vld [vmem:[%s4 + $0x60] sm:$0xff]
    %v101 = vld [vmem:[%s4 + $0x68] sm:$0xff]
    %v102 = vld [vmem:[%s4 + $0x70] sm:$0xff]
    %v103 = vld [vmem:[%s4 + $0x78] sm:$0xff]
    %v104 = vld [vmem:[%s4 + $0x80] sm:$0xff]
    %v105 = vld [vmem:[%s4 + $0x88] sm:$0xff]
    %v106 = vld [vmem:[%s4 + $0x90] sm:$0xff]
    %v107 = vld [vmem:[%s4 + $0x98] sm:$0xff]
    %v108 = vld [vmem:[%s4 + $0xa0] sm:$0xff]
    %v109 = vld [vmem:[%s4 + $0xa8] sm:$0xff]
    %v110 = vld [vmem:[%s4 + $0xb0] sm:$0xff]
    %v111 = vld [vmem:[%s4 + $0xb8] sm:$0xff]
    %v112 = vld [vmem:[%s4 + $0xc0] sm:$0xff]
    %v113 = vld [vmem:[%s4 + $0xc8] sm:$0xff]
    %v114 = vld [vmem:[%s4 + $0xd0] sm:$0xff]
    %v115 = vld [vmem:[%s4 + $0xd8] sm:$0xff]
    %v116 = vld [vmem:[%s4 + $0xe0] sm:$0xff]
    %v117 = vld [vmem:[%s4 + $0xe8] sm:$0xff]
    %v118 = vld [vmem:[%s4 + $0xf0] sm:$0xff]
    %v119 = vld [vmem:[%s4 + $0xf8] sm:$0xff]
    %v121 = vperm.slane %v87, 0
    %v122 = vperm.slane %v87, 1
    %125 = vmatpush.msra.mxu0 %v103
    %126 = vmatpush.msra.mxu0 %v102
    %127 = vmatpush.msra.mxu0 %v101
    %128 = vmatpush.msra.mxu0 %v100
    %129 = vmatpush.msra.mxu0 %v99
    %130 = vmatpush.msra.mxu0 %v98
    %131 = vmatpush.msra.mxu0 %v97
    %132 = vmatpush.msra.mxu0 %v96
    %133 = vmatpush.msra.mxu0 %v95
    %134 = vmatpush.msra.mxu0 %v94
    %135 = vmatpush.msra.mxu0 %v93
    %136 = vmatpush.msra.mxu0 %v92
    %137 = vmatpush.msra.mxu0 %v91
    %138 = vmatpush.msra.mxu0 %v90
    %139 = vmatpush.msra.mxu0 %v89
    %140 = vmatpush.msra.mxu0 %v88
    %141 = vmatmul.f32.gmra.mxu0 %v121
    %v142 = vpop.f32.mrf.mxu0
    %v143 = vadd.f32 0.0, %v142
    %144 = vdwg.mxu0
    %145 = vmatpush.msra.mxu0 %v119
    %146 = vmatpush.msra.mxu0 %v118
    %147 = vmatpush.msra.mxu0 %v117
    %148 = vmatpush.msra.mxu0 %v116
    %149 = vmatpush.msra.mxu0 %v115
    %150 = vmatpush.msra.mxu0 %v114
    %151 = vmatpush.msra.mxu0 %v113
    %152 = vmatpush.msra.mxu0 %v112
    %153 = vmatpush.msra.mxu0 %v111
    %154 = vmatpush.msra.mxu0 %v110
    %155 = vmatpush.msra.mxu0 %v109
    %156 = vmatpush.msra.mxu0 %v108
    %157 = vmatpush.msra.mxu0 %v107
    %158 = vmatpush.msra.mxu0 %v106
    %159 = vmatpush.msra.mxu0 %v105
    %160 = vmatpush.msra.mxu0 %v104
    %161 = vmatmul.f32.gmra.mxu0 %v122
    %v162 = vpop.f32.mrf.mxu0
    %v163 = vadd.f32 %v143, %v162
    %164 = vdwg.mxu0
    %v165 = vpack.c.bf16 %v163, %v163
    %v166 = vld [vmem:[%s5] sm:$0xf]
    %v167 = vld [vmem:[%s5 + $0x4] sm:$0xf]
    %v168 = vld [vmem:[%s6] sm:$0x1]
    %v171 = vunpack.c.l.b16 %v166
    %v172 = vunpack.c.l.b16 %v167
    %v173 = vpack.c.b16 %v172, %v171
    %v176 = vsel %vm48, %v165, 0
    %178 = vmatpush.bf16.msra.mxu0 0
    %179 = vmatpush.bf16.msra.mxu0 0
    %180 = vmatpush.bf16.msra.mxu0 0
    %181 = vmatpush.bf16.msra.mxu0 0
    %182 = vmatpush.bf16.msra.mxu0 0
    %183 = vmatpush.bf16.msra.mxu0 0
    %184 = vmatpush.bf16.msra.mxu0 0
    %185 = vmatpush.bf16.msra.mxu0 %v173
    %186 = vmatmul.bf16.gmra.mxu0 %v176
    %v187 = vpop.f32.mrf.mxu0
    %v188 = vadd.f32 %v168, %v187
    %v189 = vpop.f32.mrf.mxu0
    %190 = vdwg.mxu0
    %v191 = vxor.u32 %v188, 2147483648
    %v192 = vmul.f32 %v191, 1.442695
    %v193 = vpow.pop %v192
    %v194 = vadd.f32 %v193, 1.0
    %v195 = vrcp.pop %v194
    %v196 = vmul.f32 %v194, %v195
    %v197 = vsub.f32 1.0, %v196
    %v198 = vmul.f32 %v195, %v197
    %v199 = vadd.f32 %v195, %v198
    %vm200 = vweird.f32 %v194
    %vm201 = vweird.f32 %v195
    %vm202 = vmor %vm200, %vm201
    %v203 = vsel %vm202, %v195, %v199
    %v204 = vand.u32 2147483647, %v194
    %vm205 = vcmp.eq.f32.partialorder %v204, 8.507059e+37
    %v206 = vand.u32 %v194, 2147483648
    %v207 = vor.u32 1.1754944e-38, %v206
    %v208 = vsel %vm205, %v207, %v203
    %v209 = vmul.f32 1.0, %v208
    %vm210 = vcmask 122880
    %211 = vst.msk [vmem:[#allocation2] sm:$0x1] %vm210, %v209
    // Predicated region
    $region30: #{attention_forward.1} parent=1 // pred_check
      _
    $region31: #{attention_forward.1} parent=1 // pred_check_branch
      %213 = sbr.rel (0) target = $region33
    $region32: #{attention_forward.1} parent=1 // pred_region
      %215 = vsyncadd [#allocation3], 0
      %s217 = sshll.u32 [#allocation2], 4
      %s218 = int_to_ptr.vmem [resolvable:$true] %s217
      %s219 = sshll.u32 %s7, 4
      %s220 = int_to_ptr.hbm [resolvable:$true] %s219
      %222 = dma.vmem_to_hbm [thread:$0]  %s218, 16, %s220, [#allocation3]
    $region33: #{attention_forward.1} parent=1 // pred_fallthru
      _
    // Predicated region
    $region34: #{attention_forward.1} parent=1 // pred_check
      _
    $region35: #{attention_forward.1} parent=1 // pred_check_branch
      %224 = sbr.rel (0) target = $region37
    $region36: #{attention_forward.1} parent=1 // pred_region
      %226 = dma.done [#allocation3], 16
    $region37: #{attention_forward.1} parent=1 // pred_fallthru
      _
    %227 = vsyncpa [#allocation3], 1

</llo_original>
